<compile_context>
chip_gen: v7x
topology: tpu7x:2x2x1
jax: 0.10.0
libtpu: 0.0.40
codegen_flags: <defaults>
</compile_context>

<pallas_src>
import jax
import jax.numpy as jnp
from jax.experimental import pallas as pl
from jax.experimental.pallas import tpu as pltpu

LANE = 128      # vreg lane width (all TPU gens)
SUBLANE = 8     # vreg sublane count (f32)
HIDDEN = 50     # model hidden size (spec)


def _round_up(n, m):
    return ((n + m - 1) // m) * m


# ---------------------------------------------------------------------------
# Kernel: whole 3-layer MLP fused; all operands live in VMEM for one batch tile.
# ---------------------------------------------------------------------------
def mlp_kernel(x_ref, w1_ref, b1_ref, w2_ref, b2_ref, w3_ref, b3_ref, o_ref):
    dd = w1_ref.dtype  # matmul operand dtype (bf16 by default, f32 optional)
    # Layer 1: Linear + ReLU  (MXU matmul in dot dtype, f32 accumulate, f32 bias/ReLU)
    h1 = jnp.dot(x_ref[...], w1_ref[...], preferred_element_type=jnp.float32)
    h1 = jnp.maximum(h1 + b1_ref[...], 0.0)
    # Layer 2: Linear + ReLU
    h2 = jnp.dot(h1.astype(dd), w2_ref[...], preferred_element_type=jnp.float32)
    h2 = jnp.maximum(h2 + b2_ref[...], 0.0)
    # Layer 3: Linear (no activation). Output last dim = n_acts (masked vst is fine:
    # the kernel is DMA/overhead-bound and store slots have slack).
    o_ref[...] = (jnp.dot(h2.astype(dd), w3_ref[...], preferred_element_type=jnp.float32)
                  + b3_ref[...]).astype(o_ref.dtype)


# ---------------------------------------------------------------------------
# Parameter setup (PyTorch-like init) and one-time hidden-dim padding + dtype cast.
# ---------------------------------------------------------------------------
def init_params(key, obs_size, n_acts, hidden=HIDDEN):
    """Mimics torch.nn.Linear's U(-1/sqrt(fan_in), +1/sqrt(fan_in)); weights [in, out]."""
    def linear_init(k, fan_in, fan_out):
        kw, kb = jax.random.split(k)
        bound = 1.0 / jnp.sqrt(jnp.float32(fan_in))
        w = jax.random.uniform(kw, (fan_in, fan_out), jnp.float32, -bound, bound)
        b = jax.random.uniform(kb, (1, fan_out), jnp.float32, -bound, bound)
        return w, b

    k1, k2, k3 = jax.random.split(key, 3)
    w1, b1 = linear_init(k1, obs_size, hidden)
    w2, b2 = linear_init(k2, hidden, hidden)
    w3, b3 = linear_init(k3, hidden, n_acts)
    return {"w1": w1, "b1": b1, "w2": w2, "b2": b2, "w3": w3, "b3": b3}


def pad_params(params, dot_dtype=jnp.bfloat16):
    """Pad ONLY the hidden dim (50 -> 128) and cast weights to the matmul dtype.

    Zero padding is exact: padded hidden units get zero weight columns, ReLU(0)=0,
    and feed zero weight rows into the next layer.  x's feature dim (obs_size) and the
    output dim (n_acts) are left un-padded, so HBM traffic for x / out is the real bytes.
    Biases stay f32 (v5e VPU has no bf16).
    """
    obs_size, hidden = params["w1"].shape
    n_acts = params["w3"].shape[1]
    h = _round_up(hidden, LANE)

    def pad2(a, rows, cols, dtype):
        return jnp.pad(a, ((0, rows - a.shape[0]), (0, cols - a.shape[1]))).astype(dtype)

    return {
        "w1": pad2(params["w1"], obs_size, h, dot_dtype),   # (obs, 128)
        "b1": pad2(params["b1"], 1, h, jnp.float32),        # (1, 128)
        "w2": pad2(params["w2"], h, h, dot_dtype),          # (128, 128)
        "b2": pad2(params["b2"], 1, h, jnp.float32),        # (1, 128)
        "w3": pad2(params["w3"], h, n_acts, dot_dtype),     # (128, n_acts)
        "b3": params["b3"].astype(jnp.float32),             # (1, n_acts)
    }


# ---------------------------------------------------------------------------
# Forward wrapper: pads only the batch dim, tiles the batch with a 1-D grid.
# ---------------------------------------------------------------------------
def make_mpl_forward(obs_size, n_acts, hidden=HIDDEN, block_b=4096,
                     dot_dtype=jnp.bfloat16):
    """Returns a jitted forward(x[B, obs_size], padded_params) -> [B, n_acts] (f32)."""
    assert block_b % SUBLANE == 0, "block_b must be a multiple of 8"
    h = _round_up(hidden, LANE)
    # Sublane packing: bf16 packs 16 rows per vreg, f32 packs 8.
    sub = 16 if dot_dtype == jnp.bfloat16 else SUBLANE
    block_b = _round_up(block_b, sub)

    @jax.jit
    def forward(x, padded_params):
        b = x.shape[0]
        bp0 = _round_up(b, sub)
        # >=2 grid steps when possible so ("parallel",) can shard over v7x's 2 TCs;
        # large batches are capped near block_b to bound VMEM / amortize step overhead.
        n_tiles = max(pl.cdiv(bp0, block_b), 2 if bp0 > sub else 1)
        tb = _round_up(pl.cdiv(bp0, n_tiles), sub)
        bp = _round_up(b, tb)

        # Pad ONLY the batch dim; feature dim stays obs_size (full last dim -> legal block).
        xp = jnp.pad(x.astype(dot_dtype), ((0, bp - b), (0, 0)))

        weight_spec = lambda shape: pl.BlockSpec(shape, lambda i: (0, 0))
        param_bytes = sum(int(v.size) * v.dtype.itemsize
                          for v in padded_params.values())
        cost = pl.CostEstimate(
            flops=2 * bp * (obs_size * h + h * h + h * n_acts),
            transcendentals=0,
            bytes_accessed=(bp * obs_size * xp.dtype.itemsize   # x in
                            + bp * n_acts * 4                    # out
                            + param_bytes),                      # weights/biases
        )

        out = pl.pallas_call(
            mlp_kernel,
            out_shape=jax.ShapeDtypeStruct((bp, n_acts), jnp.float32),
            grid=(bp // tb,),
            in_specs=[
                pl.BlockSpec((tb, obs_size), lambda i: (i, 0)),  # x: walks the batch
                weight_spec((obs_size, h)),                      # w1 (VMEM-resident)
                weight_spec((1, h)),                             # b1
                weight_spec((h, h)),                             # w2
                weight_spec((1, h)),                             # b2
                weight_spec((h, n_acts)),                        # w3
                weight_spec((1, n_acts)),                        # b3
            ],
            out_specs=pl.BlockSpec((tb, n_acts), lambda i: (i, 0)),
            compiler_params=pltpu.CompilerParams(
                dimension_semantics=("parallel",),               # batch over v7x's 2 TCs
            ),
            cost_estimate=cost,
        )(xp, padded_params["w1"], padded_params["b1"],
          padded_params["w2"], padded_params["b2"],
          padded_params["w3"], padded_params["b3"])
        return out[:b]

    return forward


def reference_forward(x, p):
    h1 = jnp.maximum(x @ p["w1"] + p["b1"], 0.0)
    h2 = jnp.maximum(h1 @ p["w2"] + p["b2"], 0.0)
    return h2 @ p["w3"] + p["b3"]


if __name__ == "__main__":
    obs_size, n_acts = 32, 8

    key = jax.random.PRNGKey(0)
    k_params, k_x1, k_x2 = jax.random.split(key, 3)
    params = init_params(k_params, obs_size, n_acts)

    # --- bf16 matmul-operand path (default; ~2x less DMA, native MXU rate) ---------
    padded_bf16 = jax.tree_util.tree_map(jax.block_until_ready,
                                         pad_params(params, jnp.bfloat16))
    fwd = make_mpl_forward(obs_size, n_acts)                      # block_b=4096 default

    # Small acting-style batch (spec-consistent shapes).
    batch = 2
    x_small = jax.random.normal(k_x1, (batch, obs_size), jnp.float32)
    out_small = jax.block_until_ready(fwd(x_small, padded_bf16))
    ref_small = reference_forward(x_small, params)
    assert out_small.shape == (batch, n_acts)
    assert jnp.allclose(out_small, ref_small, atol=3e-2, rtol=3e-2), "small-batch mismatch"

    # Larger, non-aligned batch exercising the batch grid (>=2 grid steps for v7x).
    big_batch = 300
    x_big = jax.random.normal(k_x2, (big_batch, obs_size), jnp.float32)
    out_big = jax.block_until_ready(fwd(x_big, padded_bf16))
    ref_big = reference_forward(x_big, params)
    assert out_big.shape == (big_batch, n_acts)
    assert jnp.allclose(out_big, ref_big, atol=3e-2, rtol=3e-2), "big-batch mismatch"

    # --- f32 path (tight tolerance sanity check of the kernel structure) -----------
    padded_f32 = jax.tree_util.tree_map(jax.block_until_ready,
                                        pad_params(params, jnp.float32))
    fwd_f32 = make_mpl_forward(obs_size, n_acts, dot_dtype=jnp.float32)
    out_f32 = jax.block_until_ready(fwd_f32(x_big, padded_f32))
    assert jnp.allclose(out_f32, ref_big, atol=1e-5, rtol=1e-5), "f32-path mismatch"

    print("KERNEL_OK")
</pallas_src>

<mosaic_0001>
module attributes {stable_mosaic.version = 11 : i64} {
  func.func @mlp_kernel(%arg0: i32, %arg1: memref<16x32xbf16, #tpu.memory_space<vmem>>, %arg2: memref<32x128xbf16, #tpu.memory_space<vmem>>, %arg3: memref<1x128xf32, #tpu.memory_space<vmem>>, %arg4: memref<128x128xbf16, #tpu.memory_space<vmem>>, %arg5: memref<1x128xf32, #tpu.memory_space<vmem>>, %arg6: memref<128x8xbf16, #tpu.memory_space<vmem>>, %arg7: memref<1x8xf32, #tpu.memory_space<vmem>>, %arg8: memref<16x8xf32, #tpu.memory_space<vmem>>) attributes {dimension_semantics = [#tpu.dimension_semantics<parallel>], iteration_bounds = array<i64: 1>, scalar_prefetch = 0 : i64, scratch_operands = 0 : i64, tpu.core_type = #tpu.core_type<tc>, window_params = [{transform_indices = @transform_0, window_bounds = array<i64: 16, 32>}, {pipeline_mode = #tpu.pipeline_mode<synchronous>, transform_indices = @transform_1, window_bounds = array<i64: 32, 128>}, {pipeline_mode = #tpu.pipeline_mode<synchronous>, transform_indices = @transform_2, window_bounds = array<i64: 1, 128>}, {pipeline_mode = #tpu.pipeline_mode<synchronous>, transform_indices = @transform_3, window_bounds = array<i64: 128, 128>}, {pipeline_mode = #tpu.pipeline_mode<synchronous>, transform_indices = @transform_4, window_bounds = array<i64: 1, 128>}, {pipeline_mode = #tpu.pipeline_mode<synchronous>, transform_indices = @transform_5, window_bounds = array<i64: 128, 8>}, {pipeline_mode = #tpu.pipeline_mode<synchronous>, transform_indices = @transform_6, window_bounds = array<i64: 1, 8>}, {transform_indices = @transform_7, window_bounds = array<i64: 16, 8>}]} {
    %c0 = arith.constant 0 : index
    %c0_0 = arith.constant 0 : index
    %0 = vector.load %arg1[%c0, %c0_0] : memref<16x32xbf16, #tpu.memory_space<vmem>>, vector<16x32xbf16>
    %c0_1 = arith.constant 0 : index
    %c0_2 = arith.constant 0 : index
    %1 = vector.load %arg2[%c0_1, %c0_2] : memref<32x128xbf16, #tpu.memory_space<vmem>>, vector<32x128xbf16>
    %cst = arith.constant dense<0.000000e+00> : vector<16x128xf32>
    %2 = tpu.matmul %0, %1, %cst {dimension_numbers = #tpu.dot_dimension_numbers<[1], [0], [0], [1], [0, 0, 1, 1], [], []>} : vector<16x32xbf16>, vector<32x128xbf16>, vector<16x128xf32> -> vector<16x128xf32>
    %c0_3 = arith.constant 0 : index
    %c0_4 = arith.constant 0 : index
    %3 = vector.load %arg3[%c0_3, %c0_4] : memref<1x128xf32, #tpu.memory_space<vmem>>, vector<1x128xf32>
    %4 = vector.broadcast %3 : vector<1x128xf32> to vector<16x128xf32>
    %5 = arith.addf %2, %4 : vector<16x128xf32>
    %cst_5 = arith.constant 0.000000e+00 : f32
    %6 = vector.broadcast %cst_5 : f32 to vector<16x128xf32>
    %7 = arith.maximumf %5, %6 : vector<16x128xf32>
    %8 = arith.truncf %7 : vector<16x128xf32> to vector<16x128xbf16>
    %c0_6 = arith.constant 0 : index
    %c0_7 = arith.constant 0 : index
    %9 = vector.load %arg4[%c0_6, %c0_7] : memref<128x128xbf16, #tpu.memory_space<vmem>>, vector<128x128xbf16>
    %cst_8 = arith.constant dense<0.000000e+00> : vector<16x128xf32>
    %10 = tpu.matmul %8, %9, %cst_8 {dimension_numbers = #tpu.dot_dimension_numbers<[1], [0], [0], [1], [0, 0, 1, 1], [], []>} : vector<16x128xbf16>, vector<128x128xbf16>, vector<16x128xf32> -> vector<16x128xf32>
    %c0_9 = arith.constant 0 : index
    %c0_10 = arith.constant 0 : index
    %11 = vector.load %arg5[%c0_9, %c0_10] : memref<1x128xf32, #tpu.memory_space<vmem>>, vector<1x128xf32>
    %12 = vector.broadcast %11 : vector<1x128xf32> to vector<16x128xf32>
    %13 = arith.addf %10, %12 : vector<16x128xf32>
    %cst_11 = arith.constant 0.000000e+00 : f32
    %14 = vector.broadcast %cst_11 : f32 to vector<16x128xf32>
    %15 = arith.maximumf %13, %14 : vector<16x128xf32>
    %16 = arith.truncf %15 : vector<16x128xf32> to vector<16x128xbf16>
    %c0_12 = arith.constant 0 : index
    %c0_13 = arith.constant 0 : index
    %17 = vector.load %arg6[%c0_12, %c0_13] : memref<128x8xbf16, #tpu.memory_space<vmem>>, vector<128x8xbf16>
    %cst_14 = arith.constant dense<0.000000e+00> : vector<16x8xf32>
    %18 = tpu.matmul %16, %17, %cst_14 {dimension_numbers = #tpu.dot_dimension_numbers<[1], [0], [0], [1], [0, 0, 1, 1], [], []>} : vector<16x128xbf16>, vector<128x8xbf16>, vector<16x8xf32> -> vector<16x8xf32>
    %c0_15 = arith.constant 0 : index
    %c0_16 = arith.constant 0 : index
    %19 = vector.load %arg7[%c0_15, %c0_16] : memref<1x8xf32, #tpu.memory_space<vmem>>, vector<1x8xf32>
    %20 = vector.broadcast %19 : vector<1x8xf32> to vector<16x8xf32>
    %21 = arith.addf %18, %20 : vector<16x8xf32>
    %c0_17 = arith.constant 0 : index
    %c0_18 = arith.constant 0 : index
    %22 = vector.load %arg8[%c0_17, %c0_18] : memref<16x8xf32, #tpu.memory_space<vmem>>, vector<16x8xf32>
    tpu.vector_store %arg8[%c0_17, %c0_18], %21 {strides = array<i32>} : memref<16x8xf32, #tpu.memory_space<vmem>>, vector<16x8xf32>,
    return
  }
  func.func @transform_0(%arg0: i32) -> (i32, i32) {
    %c0_i32 = arith.constant 0 : i32
    %c0_i32_0 = arith.constant 0 : i32
    return %arg0, %c0_i32 : i32, i32
  }
  func.func @transform_1(%arg0: i32) -> (i32, i32) {
    %c0_i32 = arith.constant 0 : i32
    %c0_i32_0 = arith.constant 0 : i32
    %c0_i32_1 = arith.constant 0 : i32
    return %c0_i32, %c0_i32_0 : i32, i32
  }
  func.func @transform_2(%arg0: i32) -> (i32, i32) {
    %c0_i32 = arith.constant 0 : i32
    %c0_i32_0 = arith.constant 0 : i32
    %c0_i32_1 = arith.constant 0 : i32
    return %c0_i32, %c0_i32_0 : i32, i32
  }
  func.func @transform_3(%arg0: i32) -> (i32, i32) {
    %c0_i32 = arith.constant 0 : i32
    %c0_i32_0 = arith.constant 0 : i32
    %c0_i32_1 = arith.constant 0 : i32
    return %c0_i32, %c0_i32_0 : i32, i32
  }
  func.func @transform_4(%arg0: i32) -> (i32, i32) {
    %c0_i32 = arith.constant 0 : i32
    %c0_i32_0 = arith.constant 0 : i32
    %c0_i32_1 = arith.constant 0 : i32
    return %c0_i32, %c0_i32_0 : i32, i32
  }
  func.func @transform_5(%arg0: i32) -> (i32, i32) {
    %c0_i32 = arith.constant 0 : i32
    %c0_i32_0 = arith.constant 0 : i32
    %c0_i32_1 = arith.constant 0 : i32
    return %c0_i32, %c0_i32_0 : i32, i32
  }
  func.func @transform_6(%arg0: i32) -> (i32, i32) {
    %c0_i32 = arith.constant 0 : i32
    %c0_i32_0 = arith.constant 0 : i32
    %c0_i32_1 = arith.constant 0 : i32
    return %c0_i32, %c0_i32_0 : i32, i32
  }
  func.func @transform_7(%arg0: i32) -> (i32, i32) {
    %c0_i32 = arith.constant 0 : i32
    %c0_i32_0 = arith.constant 0 : i32
    return %arg0, %c0_i32 : i32, i32
  }
}

</mosaic_0001>

<llo_original>
// kernel: forward.1
$region0: #{forward.1}
  #allocation0 [shape = 'u32[]', space=smem, size = 0x4, offset = 0x4, fixed_abs, tag = 'smem constant byte address 0x4 - core index']
  #allocation1 [shape = 'u32[144,128]{1,0:T(1,128)}', space=vmem, size = 0x12000, scoped, tag = 'internal scratch']
  %s0 = inlined_call_operand.vmem [shape: bf16[16,32], index: 0, kind: input, shape index: {}]
  %s1 = inlined_call_operand.vmem [shape: bf16[32,128], index: 1, kind: input, shape index: {}]
  %s2 = inlined_call_operand.vmem [shape: f32[1,128], index: 2, kind: input, shape index: {}]
  %s3 = inlined_call_operand.vmem [shape: bf16[128,128], index: 3, kind: input, shape index: {}]
  %s4 = inlined_call_operand.vmem [shape: f32[1,128], index: 4, kind: input, shape index: {}]
  %s5 = inlined_call_operand.vmem [shape: bf16[128,8], index: 5, kind: input, shape index: {}]
  %s6 = inlined_call_operand.vmem [shape: f32[1,8], index: 6, kind: input, shape index: {}]
  %s7 = inlined_call_operand.vmem [shape: f32[16,8], index: 7, kind: output, shape index: {}]
  %s8 = sld [smem:[#allocation0]]
  $region38: #{forward.1} parent=0
    _
  %s10 = ssub.s32 1, %s8
  %s11 = scalar_select 0, %s10, %s8
  // Predicated region
  $region2: #{forward.1} parent=0 // pred_check
    _
  $region3: #{forward.1} parent=0 // pred_check_branch
    %13 = sbr.rel (0) target = $region5
  $region4: #{forward.1} parent=0 // pred_region
    _
  $region5: #{forward.1} parent=0 // pred_fallthru
    _
  // Predicated region
  $region6: #{forward.1} parent=0 // pred_check
    _
  $region7: #{forward.1} parent=0 // pred_check_branch
    %15 = sbr.rel (0) target = $region9
  $region8: #{forward.1} parent=0 // pred_region
    _
  $region9: #{forward.1} parent=0 // pred_fallthru
    _
  // Predicated region
  $region10: #{forward.1} parent=0 // pred_check
    _
  $region11: #{forward.1} parent=0 // pred_check_branch
    %17 = sbr.rel (0) target = $region13
  $region12: #{forward.1} parent=0 // pred_region
    _
  $region13: #{forward.1} parent=0 // pred_fallthru
    _
  // Predicated region
  $region14: #{forward.1} parent=0 // pred_check
    _
  $region15: #{forward.1} parent=0 // pred_check_branch
    %19 = sbr.rel (0) target = $region17
  $region16: #{forward.1} parent=0 // pred_region
    _
  $region17: #{forward.1} parent=0 // pred_fallthru
    _
  // Predicated region
  $region18: #{forward.1} parent=0 // pred_check
    _
  $region19: #{forward.1} parent=0 // pred_check_branch
    %21 = sbr.rel (0) target = $region21
  $region20: #{forward.1} parent=0 // pred_region
    _
  $region21: #{forward.1} parent=0 // pred_fallthru
    _
  // Predicated region
  $region22: #{forward.1} parent=0 // pred_check
    _
  $region23: #{forward.1} parent=0 // pred_check_branch
    %23 = sbr.rel (0) target = $region25
  $region24: #{forward.1} parent=0 // pred_region
    _
  $region25: #{forward.1} parent=0 // pred_fallthru
    _
  // Predicated region
  $region26: #{forward.1} parent=0 // pred_check
    _
  $region27: #{forward.1} parent=0 // pred_check_branch
    %25 = sbr.rel (0) target = $region29
  $region28: #{forward.1} parent=0 // pred_region
    _
  $region29: #{forward.1} parent=0 // pred_fallthru
    _
  %v27 = vld [vmem:[%s0] sm:$0xf]
  %v28 = vld [vmem:[%s0 + $0x4] sm:$0xf]
  %v29 = vld [vmem:[%s1] sm:$0xf]
  %v30 = vld [vmem:[%s1 + $0x4] sm:$0xf]
  %v31 = vld [vmem:[%s1 + $0x8] sm:$0xf]
  %v32 = vld [vmem:[%s1 + $0xc] sm:$0xf]
  %v33 = vld [vmem:[%s2] sm:$0x1]
  %v35 = vlaneseq
  %v36 = vshrl.u32 %v35, 7
  %v37 = vsub.s32 0, %v36
  %v38 = vrot.slane %v33, %v37
  %v42 = vunpack.c.l.b16 %v27
  %v43 = vunpack.c.l.b16 %v28
  %v44 = vpack.c.b16 %v43, %v42
  %v49 = vunpack.c.l.b16 %v29
  %v50 = vunpack.c.l.b16 %v30
  %v51 = vunpack.c.l.b16 %v31
  %v52 = vunpack.c.l.b16 %v32
  %v53 = vpack.c.b16 %v50, %v49
  %v54 = vpack.c.b16 %v52, %v51
  %vm57 = vcmask 261120
  %v59 = vsel %vm57, %v44, 0
  %61 = vmatprep.subr.bf16.mxu0 0
  %62 = vmatpush1.bf16.msra.mxu0 %v53
  %63 = vmatprep.subr.bf16.mxu0 0
  %64 = vmatpush1.bf16.msra.mxu0 %v54
  %65 = vmatprep.subr.bf16.mxu0 0
  %66 = vmatpush1.bf16.msra.mxu0 0
  %67 = vmatprep.subr.bf16.mxu0 0
  %68 = vmatpush1.bf16.msra.mxu0 0
  %69 = vmatprep.subr.bf16.mxu0 0
  %70 = vmatpush1.bf16.msra.mxu0 0
  %71 = vmatprep.subr.bf16.mxu0 0
  %72 = vmatpush1.bf16.msra.mxu0 0
  %73 = vmatprep.subr.bf16.mxu0 0
  %74 = vmatpush1.bf16.msra.mxu0 0
  %75 = vmatprep.subr.bf16.mxu0 0
  %76 = vmatpush1.bf16.msra.mxu0 0
  %77 = vmatprep.subr.bf16.mxu0 0
  %78 = vmatpush1.bf16.msra.mxu0 0
  %79 = vmatprep.subr.bf16.mxu0 0
  %80 = vmatpush1.bf16.msra.mxu0 0
  %81 = vmatprep.subr.bf16.mxu0 0
  %82 = vmatpush1.bf16.msra.mxu0 0
  %83 = vmatprep.subr.bf16.mxu0 0
  %84 = vmatpush1.bf16.msra.mxu0 0
  %85 = vmatprep.subr.bf16.mxu0 0
  %86 = vmatpush1.bf16.msra.mxu0 0
  %87 = vmatprep.subr.bf16.mxu0 0
  %88 = vmatpush1.bf16.msra.mxu0 0
  %89 = vmatprep.subr.bf16.mxu0 0
  %90 = vmatpush1.bf16.msra.mxu0 0
  %91 = vmatprep.subr.bf16.mxu0 0
  %92 = vmatpush1.bf16.msra.mxu0 0
  %93 = vmatprep.mubr.bf16.mxu0 0
  %94 = vmatmul.mubr.bf16.gmra.mrb[0].mxu0 %v59
  %v95 = vpop.f32.mrb[0].mxu0
  %v96 = vadd.f32 %v38, %v95
  %v97 = vpop.f32.mrb[0].mxu0
  %v98 = vpop.f32.mrb[0].mxu0
  %v99 = vadd.f32 %v38, %v98
  %v100 = vpop.f32.mrb[0].mxu0
  %101 = vdwg.mxu0
  %v102 = vmax.f32 %v96, 0.0
  %v103 = vmax.f32 %v99, 0.0
  %v104 = vpack.c.bf16 %v103, %v102
  %v105 = vld [vmem:[%s3] sm:$0xf]
  %v106 = vld [vmem:[%s3 + $0x4] sm:$0xf]
  %v107 = vld [vmem:[%s3 + $0x8] sm:$0xf]
  %v108 = vld [vmem:[%s3 + $0xc] sm:$0xf]
  %v109 = vld [vmem:[%s3 + $0x10] sm:$0xf]
  %v110 = vld [vmem:[%s3 + $0x14] sm:$0xf]
  %v111 = vld [vmem:[%s3 + $0x18] sm:$0xf]
  %v112 = vld [vmem:[%s3 + $0x1c] sm:$0xf]
  %v113 = vld [vmem:[%s3 + $0x20] sm:$0xf]
  %v114 = vld [vmem:[%s3 + $0x24] sm:$0xf]
  %v115 = vld [vmem:[%s3 + $0x28] sm:$0xf]
  %v116 = vld [vmem:[%s3 + $0x2c] sm:$0xf]
  %v117 = vld [vmem:[%s3 + $0x30] sm:$0xf]
  %v118 = vld [vmem:[%s3 + $0x34] sm:$0xf]
  %v119 = vld [vmem:[%s3 + $0x38] sm:$0xf]
  %v120 = vld [vmem:[%s3 + $0x3c] sm:$0xf]
  %v121 = vld [vmem:[%s4] sm:$0x1]
  %v123 = vlaneseq
  %v124 = vshrl.u32 %v123, 7
  %v125 = vsub.s32 0, %v124
  %v126 = vrot.slane %v121, %v125
  %v144 = vunpack.c.l.b16 %v105
  %v145 = vunpack.c.l.b16 %v106
  %v146 = vunpack.c.l.b16 %v107
  %v147 = vunpack.c.l.b16 %v108
  %v148 = vunpack.c.l.b16 %v109
  %v149 = vunpack.c.l.b16 %v110
  %v150 = vunpack.c.l.b16 %v111
  %v151 = vunpack.c.l.b16 %v112
  %v152 = vunpack.c.l.b16 %v113
  %v153 = vunpack.c.l.b16 %v114
  %v154 = vunpack.c.l.b16 %v115
  %v155 = vunpack.c.l.b16 %v116
  %v156 = vunpack.c.l.b16 %v117
  %v157 = vunpack.c.l.b16 %v118
  %v158 = vunpack.c.l.b16 %v119
  %v159 = vunpack.c.l.b16 %v120
  %v160 = vpack.c.b16 %v145, %v144
  %v161 = vpack.c.b16 %v147, %v146
  %v162 = vpack.c.b16 %v149, %v148
  %v163 = vpack.c.b16 %v151, %v150
  %v164 = vpack.c.b16 %v153, %v152
  %v165 = vpack.c.b16 %v155, %v154
  %v166 = vpack.c.b16 %v157, %v156
  %v167 = vpack.c.b16 %v159, %v158
  %176 = vmatprep.subr.bf16.mxu0 0
  %177 = vmatpush1.bf16.msra.mxu0 %v160
  %178 = vmatprep.subr.bf16.mxu0 0
  %179 = vmatpush1.bf16.msra.mxu0 %v161
  %180 = vmatprep.subr.bf16.mxu0 0
  %181 = vmatpush1.bf16.msra.mxu0 %v162
  %182 = vmatprep.subr.bf16.mxu0 0
  %183 = vmatpush1.bf16.msra.mxu0 %v163
  %184 = vmatprep.subr.bf16.mxu0 0
  %185 = vmatpush1.bf16.msra.mxu0 %v164
  %186 = vmatprep.subr.bf16.mxu0 0
  %187 = vmatpush1.bf16.msra.mxu0 %v165
  %188 = vmatprep.subr.bf16.mxu0 0
  %189 = vmatpush1.bf16.msra.mxu0 %v166
  %190 = vmatprep.subr.bf16.mxu0 0
  %191 = vmatpush1.bf16.msra.mxu0 %v167
  %192 = vmatprep.subr.bf16.mxu0 0
  %193 = vmatpush1.bf16.msra.mxu0 0
  %194 = vmatprep.subr.bf16.mxu0 0
  %195 = vmatpush1.bf16.msra.mxu0 0
  %196 = vmatprep.subr.bf16.mxu0 0
  %197 = vmatpush1.bf16.msra.mxu0 0
  %198 = vmatprep.subr.bf16.mxu0 0
  %199 = vmatpush1.bf16.msra.mxu0 0
  %200 = vmatprep.subr.bf16.mxu0 0
  %201 = vmatpush1.bf16.msra.mxu0 0
  %202 = vmatprep.subr.bf16.mxu0 0
  %203 = vmatpush1.bf16.msra.mxu0 0
  %204 = vmatprep.subr.bf16.mxu0 0
  %205 = vmatpush1.bf16.msra.mxu0 0
  %206 = vmatprep.subr.bf16.mxu0 0
  %207 = vmatpush1.bf16.msra.mxu0 0
  %208 = vmatprep.mubr.bf16.mxu0 0
  %209 = vmatmul.mubr.bf16.gmra.mrb[0].mxu0 %v104
  %v210 = vpop.f32.mrb[0].mxu0
  %v211 = vadd.f32 %v126, %v210
  %v212 = vpop.f32.mrb[0].mxu0
  %v213 = vpop.f32.mrb[0].mxu0
  %v214 = vadd.f32 %v126, %v213
  %v215 = vpop.f32.mrb[0].mxu0
  %216 = vdwg.mxu0
  %v217 = vmax.f32 %v211, 0.0
  %v218 = vmax.f32 %v214, 0.0
  %v219 = vpack.c.bf16 %v218, %v217
  %v220 = vld [vmem:[%s5] sm:$0xf]
  %v221 = vld [vmem:[%s5 + $0x4] sm:$0xf]
  %v222 = vld [vmem:[%s5 + $0x8] sm:$0xf]
  %v223 = vld [vmem:[%s5 + $0xc] sm:$0xf]
  %v224 = vld [vmem:[%s5 + $0x10] sm:$0xf]
  %v225 = vld [vmem:[%s5 + $0x14] sm:$0xf]
  %v226 = vld [vmem:[%s5 + $0x18] sm:$0xf]
  %v227 = vld [vmem:[%s5 + $0x1c] sm:$0xf]
  %v228 = vld [vmem:[%s5 + $0x20] sm:$0xf]
  %v229 = vld [vmem:[%s5 + $0x24] sm:$0xf]
  %v230 = vld [vmem:[%s5 + $0x28] sm:$0xf]
  %v231 = vld [vmem:[%s5 + $0x2c] sm:$0xf]
  %v232 = vld [vmem:[%s5 + $0x30] sm:$0xf]
  %v233 = vld [vmem:[%s5 + $0x34] sm:$0xf]
  %v234 = vld [vmem:[%s5 + $0x38] sm:$0xf]
  %v235 = vld [vmem:[%s5 + $0x3c] sm:$0xf]
  %v236 = vld [vmem:[%s6] sm:$0x1]
  %v238 = vlaneseq
  %v239 = vshrl.u32 %v238, 7
  %v240 = vsub.s32 0, %v239
  %v241 = vrot.slane %v236, %v240
  %v259 = vunpack.c.l.b16 %v220
  %v260 = vunpack.c.l.b16 %v221
  %v261 = vunpack.c.l.b16 %v222
  %v262 = vunpack.c.l.b16 %v223
  %v263 = vunpack.c.l.b16 %v224
  %v264 = vunpack.c.l.b16 %v225
  %v265 = vunpack.c.l.b16 %v226
  %v266 = vunpack.c.l.b16 %v227
  %v267 = vunpack.c.l.b16 %v228
  %v268 = vunpack.c.l.b16 %v229
  %v269 = vunpack.c.l.b16 %v230
  %v270 = vunpack.c.l.b16 %v231
  %v271 = vunpack.c.l.b16 %v232
  %v272 = vunpack.c.l.b16 %v233
  %v273 = vunpack.c.l.b16 %v234
  %v274 = vunpack.c.l.b16 %v235
  %v275 = vpack.c.b16 %v260, %v259
  %v276 = vpack.c.b16 %v262, %v261
  %v277 = vpack.c.b16 %v264, %v263
  %v278 = vpack.c.b16 %v266, %v265
  %v279 = vpack.c.b16 %v268, %v267
  %v280 = vpack.c.b16 %v270, %v269
  %v281 = vpack.c.b16 %v272, %v271
  %v282 = vpack.c.b16 %v274, %v273
  %291 = vmatprep.subr.bf16.mxu0 0
  %292 = vmatpush1.bf16.msra.mxu0 %v275
  %293 = vmatprep.subr.bf16.mxu0 0
  %294 = vmatpush1.bf16.msra.mxu0 %v276
  %295 = vmatprep.subr.bf16.mxu0 0
  %296 = vmatpush1.bf16.msra.mxu0 %v277
  %297 = vmatprep.subr.bf16.mxu0 0
  %298 = vmatpush1.bf16.msra.mxu0 %v278
  %299 = vmatprep.subr.bf16.mxu0 0
  %300 = vmatpush1.bf16.msra.mxu0 %v279
  %301 = vmatprep.subr.bf16.mxu0 0
  %302 = vmatpush1.bf16.msra.mxu0 %v280
  %303 = vmatprep.subr.bf16.mxu0 0
  %304 = vmatpush1.bf16.msra.mxu0 %v281
  %305 = vmatprep.subr.bf16.mxu0 0
  %306 = vmatpush1.bf16.msra.mxu0 %v282
  %307 = vmatprep.subr.bf16.mxu0 0
  %308 = vmatpush1.bf16.msra.mxu0 0
  %309 = vmatprep.subr.bf16.mxu0 0
  %310 = vmatpush1.bf16.msra.mxu0 0
  %311 = vmatprep.subr.bf16.mxu0 0
  %312 = vmatpush1.bf16.msra.mxu0 0
  %313 = vmatprep.subr.bf16.mxu0 0
  %314 = vmatpush1.bf16.msra.mxu0 0
  %315 = vmatprep.subr.bf16.mxu0 0
  %316 = vmatpush1.bf16.msra.mxu0 0
  %317 = vmatprep.subr.bf16.mxu0 0
  %318 = vmatpush1.bf16.msra.mxu0 0
  %319 = vmatprep.subr.bf16.mxu0 0
  %320 = vmatpush1.bf16.msra.mxu0 0
  %321 = vmatprep.subr.bf16.mxu0 0
  %322 = vmatpush1.bf16.msra.mxu0 0
  %323 = vmatprep.mubr.bf16.mxu0 0
  %324 = vmatmul.mubr.bf16.gmra.mrb[0].mxu0 %v219
  %v325 = vpop.f32.mrb[0].mxu0
  %v326 = vadd.f32 %v241, %v325
  %v327 = vpop.f32.mrb[0].mxu0
  %v328 = vpop.f32.mrb[0].mxu0
  %v329 = vadd.f32 %v241, %v328
  %v330 = vpop.f32.mrb[0].mxu0
  %331 = vdwg.mxu0
  %vm332 = vcmask 64512
  %333 = vst.msk [vmem:[%s7] sm:$0xff] %vm332, %v326
  %334 = vst.msk [vmem:[%s7 + $0x8] sm:$0xff] %vm332, %v329
  // Predicated region
  $region30: #{forward.1} parent=0 // pred_check
    _
  $region31: #{forward.1} parent=0 // pred_check_branch
    %336 = sbr.rel (0) target = $region33
  $region32: #{forward.1} parent=0 // pred_region
    _
  $region33: #{forward.1} parent=0 // pred_fallthru
    _
  // Predicated region
  $region34: #{forward.1} parent=0 // pred_check
    _
  $region35: #{forward.1} parent=0 // pred_check_branch
    %338 = sbr.rel (0) target = $region37
  $region36: #{forward.1} parent=0 // pred_region
    _
  $region37: #{forward.1} parent=0 // pred_fallthru
    _

</llo_original>
